<compile_context>
chip_gen: v7x
topology: tpu7x:2x2x1
jax: 0.10.0
libtpu: 0.0.40
codegen_flags: <defaults>
</compile_context>

<pallas_src>
import functools

import jax
import jax.numpy as jnp
from jax.experimental import pallas as pl
from jax.experimental.pallas import tpu as pltpu


def _round_up(x, m):
    return ((x + m - 1) // m) * m


def _superfelt_kernel(xt_ref, wt_ref, bw_ref, bcl_ref, out_ref):
    """Fused SuperFelt forward on one batch tile (batch on lanes).

    xt_ref : (D_tot, TB)    inputs (concat of e|m|c), transposed, batch on lanes
    wt_ref : (H_tot, D_tot) block-diagonal encoder weight, transposed
    bw_ref : (H_tot, 2)     column 0: encoder bias, column 1: classifier weight
    bcl_ref: (1, 1)         classifier bias (f32, SMEM scalar)
    out_ref: (1, TB)        sigmoid probabilities, batch on lanes
    """
    f32 = jnp.float32

    # Upcast (possibly bf16) DMA'd operands to f32 so the matmul is always
    # F32 x F32 = F32 (portable), with f32 accumulation either way.
    x = xt_ref[...].astype(f32)
    w = wt_ref[...].astype(f32)

    # One fused (block-diagonal) encoder matmul on the MXU:
    #   enc^T = ReLU(W_bd^T @ x^T + b)    -> (H_tot, TB)
    enc = jnp.dot(w, x, preferred_element_type=f32)
    bw = bw_ref[...]
    b_col = bw[:, 0:1]       # (H_tot, 1) encoder bias
    wcl_col = bw[:, 1:2]     # (H_tot, 1) classifier weight
    enc = jnp.maximum(enc + b_col, 0.0)

    # Classifier (concat @ w_cls + b_cls) as a VPU multiply + sublane reduce
    # instead of a 1-wide MXU matmul; result is naturally lane-dense (1, TB).
    logits = jnp.sum(enc * wcl_col, axis=0, keepdims=True) + bcl_ref[0, 0]

    out_ref[...] = jax.nn.sigmoid(logits).astype(out_ref.dtype)


def prepare_superfelt_params(params, compute_dtype=jnp.bfloat16):
    """One-time parameter fusion (run once, reuse across forward calls).

    Builds the transposed block-diagonal encoder weight (storage dtype
    `compute_dtype`), the merged (H_tot, 2) bias / classifier-weight array,
    and the classifier bias scalar.
    """
    De, He = params["we"].shape
    Dm, Hm = params["wm"].shape
    Dc, Hc = params["wc"].shape
    D_tot = De + Dm + Dc
    H_tot = He + Hm + Hc

    w_bd = jnp.zeros((D_tot, H_tot), jnp.float32)
    w_bd = w_bd.at[:De, :He].set(params["we"])
    w_bd = w_bd.at[De:De + Dm, He:He + Hm].set(params["wm"])
    w_bd = w_bd.at[De + Dm:, He + Hm:].set(params["wc"])
    w_t = w_bd.T.astype(compute_dtype)                                # (H_tot, D_tot)

    b_col = jnp.concatenate(
        [params["be"], params["bm"], params["bc"]], axis=-1
    ).reshape(H_tot, 1).astype(jnp.float32)                           # (H_tot, 1)
    wcl_col = jnp.concatenate(
        [params["wcl_e"], params["wcl_m"], params["wcl_c"]], axis=0
    ).astype(jnp.float32)                                             # (H_tot, 1)
    bw = jnp.concatenate([b_col, wcl_col], axis=1)                    # (H_tot, 2)
    bcl = params["bcl"].reshape(1, 1).astype(jnp.float32)             # (1, 1)
    return {"w_t": w_t, "bw": bw, "bcl": bcl}


@functools.partial(jax.jit, static_argnames=("tile_b",))
def superfelt_forward(e, m, c, prepared, tile_b=512):
    B = e.shape[0]
    De, Dm, Dc = e.shape[1], m.shape[1], c.shape[1]
    w_t, bw, bcl = prepared["w_t"], prepared["bw"], prepared["bcl"]
    H_tot, D_tot = w_t.shape
    assert D_tot == De + Dm + Dc, (D_tot, De, Dm, Dc)
    compute_dtype = w_t.dtype   # storage/DMA dtype for x^T (bf16 halves bytes)

    # Effective batch tile: multiple of 128, as large as requested, but capped
    # so the "parallel" batch axis keeps >= 2 grid steps whenever B > 128
    # (keeps both v7x TensorCores busy; harmless on single-TC v5e/v6e).
    tile = max(128, min(_round_up(tile_b, 128), _round_up(pl.cdiv(B, 2), 128)))
    num_tiles = pl.cdiv(B, tile)
    B_pad = num_tiles * tile

    # Single materialization of the transposed / cast / zero-padded input slab
    # (no separate concat + pad + transpose HBM passes).  Padded tail lanes
    # are zero; each output lane depends only on its own input lane, so the
    # padding cannot contaminate real rows (tail sliced off below).
    x_t = jnp.zeros((D_tot, B_pad), compute_dtype)
    x_t = x_t.at[:De, :B].set(e.T.astype(compute_dtype))
    x_t = x_t.at[De:De + Dm, :B].set(m.T.astype(compute_dtype))
    x_t = x_t.at[De + Dm:, :B].set(c.T.astype(compute_dtype))

    out = pl.pallas_call(
        _superfelt_kernel,
        out_shape=jax.ShapeDtypeStruct((1, B_pad), jnp.float32),
        grid_spec=pltpu.PrefetchScalarGridSpec(
            num_scalar_prefetch=0,
            grid=(num_tiles,),
            in_specs=[
                pl.BlockSpec((D_tot, tile), lambda i: (0, i)),      # x^T tile
                pl.BlockSpec((H_tot, D_tot), lambda i: (0, 0)),     # W_bd^T
                pl.BlockSpec((H_tot, 2), lambda i: (0, 0)),         # bias | w_cls
                pl.BlockSpec(memory_space=pltpu.MemorySpace.SMEM),  # classifier bias
            ],
            out_specs=pl.BlockSpec((1, tile), lambda i: (0, i)),    # lane-dense out
        ),
        compiler_params=pltpu.CompilerParams(
            dimension_semantics=("parallel",),
        ),
    )(x_t, w_t, bw, bcl)

    # (1, B_pad) batch-on-lanes  ->  (B, 1)
    return out.reshape(B_pad, 1)[:B]


def _reference_forward(e, m, c, params):
    """Pure-JAX reference mirroring the PyTorch module semantics."""
    enc_e = jax.nn.relu(e @ params["we"] + params["be"])
    enc_m = jax.nn.relu(m @ params["wm"] + params["bm"])
    enc_c = jax.nn.relu(c @ params["wc"] + params["bc"])
    concat = jnp.concatenate([enc_e, enc_m, enc_c], axis=-1)
    w_cls = jnp.concatenate(
        [params["wcl_e"], params["wcl_m"], params["wcl_c"]], axis=0
    )
    return jax.nn.sigmoid(concat @ w_cls + params["bcl"])


def _make_params(key, De, Dm, Dc, He, Hm, Hc):
    ks = jax.random.split(key, 4)
    # PyTorch nn.Linear stores W as (out, in) and computes x @ W.T + b;
    # we directly materialize the (in, out) orientation used here.
    def lin(k, din, dout):
        scale = 1.0 / jnp.sqrt(jnp.float32(din))
        kw, kb = jax.random.split(k)
        w = jax.random.uniform(kw, (din, dout), jnp.float32, -scale, scale)
        b = jax.random.uniform(kb, (1, dout), jnp.float32, -scale, scale)
        return w, b

    we, be = lin(ks[0], De, He)
    wm, bm = lin(ks[1], Dm, Hm)
    wc, bc = lin(ks[2], Dc, Hc)
    w_cls, b_cls = lin(ks[3], He + Hm + Hc, 1)
    return {
        "we": we, "be": be,
        "wm": wm, "bm": bm,
        "wc": wc, "bc": bc,
        "wcl_e": w_cls[:He],
        "wcl_m": w_cls[He:He + Hm],
        "wcl_c": w_cls[He + Hm:],
        "bcl": b_cls,
    }


if __name__ == "__main__":
    De, Dm, Dc = 16, 24, 32      # per-omics input feature dims
    He, Hm, Hc = 32, 32, 32      # encoder hidden dims

    key = jax.random.PRNGKey(0)
    params = _make_params(jax.random.fold_in(key, 1234), De, Dm, Dc, He, Hm, Hc)

    # One-time parameter preparation (hoisted out of the per-call path).
    prepared_f32 = prepare_superfelt_params(params, compute_dtype=jnp.float32)
    prepared_bf16 = prepare_superfelt_params(params, compute_dtype=jnp.bfloat16)

    def run_and_check(B, tile_b, prepared, atol):
        ke, km, kc = jax.random.split(jax.random.fold_in(key, B), 3)
        e = jax.random.normal(ke, (B, De), jnp.float32)
        m = jax.random.normal(km, (B, Dm), jnp.float32)
        c = jax.random.normal(kc, (B, Dc), jnp.float32)
        out = jax.block_until_ready(
            superfelt_forward(e, m, c, prepared, tile_b=tile_b))
        ref = _reference_forward(e, m, c, params)
        assert out.shape == (B, 1), out.shape
        err = float(jnp.max(jnp.abs(out - ref)))
        assert err < atol, (
            f"mismatch vs reference: max abs err {err} "
            f"(B={B}, tile_b={tile_b}, dtype={prepared['w_t'].dtype})"
        )

    # f32 storage path (tight check), including a non-multiple-of-tile batch to
    # exercise the cdiv + padding tail handling and a >=2-step grid.
    run_and_check(B=8,   tile_b=512, prepared=prepared_f32,  atol=1e-4)
    run_and_check(B=200, tile_b=512, prepared=prepared_f32,  atol=1e-4)
    # bf16 storage/DMA for x^T and W^T (default), f32 compute inside the kernel.
    run_and_check(B=8,   tile_b=512, prepared=prepared_bf16, atol=3e-2)

    print("KERNEL_OK")
</pallas_src>

<mosaic_0001>
module attributes {stable_mosaic.version = 11 : i64} {
  func.func @_superfelt_kernel(%arg0: i32, %arg1: memref<72x128xf32, #tpu.memory_space<vmem>>, %arg2: memref<96x72xf32, #tpu.memory_space<vmem>>, %arg3: memref<96x2xf32, #tpu.memory_space<vmem>>, %arg4: memref<1x1xf32, #tpu.memory_space<smem>>, %arg5: memref<1x128xf32, #tpu.memory_space<vmem>>) attributes {dimension_semantics = [#tpu.dimension_semantics<parallel>], iteration_bounds = array<i64: 1>, scalar_prefetch = 0 : i64, scratch_operands = 0 : i64, tpu.core_type = #tpu.core_type<tc>, window_params = [{transform_indices = @transform_0, window_bounds = array<i64: 72, 128>}, {pipeline_mode = #tpu.pipeline_mode<synchronous>, transform_indices = @transform_1, window_bounds = array<i64: 96, 72>}, {pipeline_mode = #tpu.pipeline_mode<synchronous>, transform_indices = @transform_2, window_bounds = array<i64: 96, 2>}, {transform_indices = @transform_3, window_bounds = array<i64: 1, 1>}, {transform_indices = @transform_4, window_bounds = array<i64: 1, 128>}]} {
    %c0 = arith.constant 0 : index
    %c0_0 = arith.constant 0 : index
    %0 = vector.load %arg1[%c0, %c0_0] : memref<72x128xf32, #tpu.memory_space<vmem>>, vector<72x128xf32>
    %c0_1 = arith.constant 0 : index
    %c0_2 = arith.constant 0 : index
    %1 = vector.load %arg2[%c0_1, %c0_2] : memref<96x72xf32, #tpu.memory_space<vmem>>, vector<96x72xf32>
    %cst = arith.constant dense<0.000000e+00> : vector<96x128xf32>
    %2 = tpu.matmul %1, %0, %cst {dimension_numbers = #tpu.dot_dimension_numbers<[1], [0], [0], [1], [0, 0, 1, 1], [], []>} : vector<96x72xf32>, vector<72x128xf32>, vector<96x128xf32> -> vector<96x128xf32>
    %c0_3 = arith.constant 0 : index
    %c0_4 = arith.constant 0 : index
    %3 = vector.load %arg3[%c0_3, %c0_4] : memref<96x2xf32, #tpu.memory_space<vmem>>, vector<96x2xf32>
    %4 = vector.extract_strided_slice %3 {offsets = [0, 0], sizes = [96, 1], strides = [1, 1]} : vector<96x2xf32> to vector<96x1xf32>
    %5 = vector.extract_strided_slice %3 {offsets = [0, 1], sizes = [96, 1], strides = [1, 1]} : vector<96x2xf32> to vector<96x1xf32>
    %6 = vector.broadcast %4 : vector<96x1xf32> to vector<96x128xf32>
    %7 = arith.addf %2, %6 : vector<96x128xf32>
    %cst_5 = arith.constant 0.000000e+00 : f32
    %8 = vector.broadcast %cst_5 : f32 to vector<96x128xf32>
    %9 = arith.maximumf %7, %8 : vector<96x128xf32>
    %10 = vector.broadcast %5 : vector<96x1xf32> to vector<96x128xf32>
    %11 = arith.mulf %9, %10 : vector<96x128xf32>
    %cst_6 = arith.constant dense<0.000000e+00> : vector<128xf32>
    %12 = vector.multi_reduction <add>, %11, %cst_6 [0] : vector<96x128xf32> to vector<128xf32>
    %13 = vector.shape_cast %12 : vector<128xf32> to vector<1x128xf32>
    %c0_7 = arith.constant 0 : index
    %c0_8 = arith.constant 0 : index
    %14 = memref.load %arg4[%c0_7, %c0_8] : memref<1x1xf32, #tpu.memory_space<smem>>
    %15 = vector.broadcast %14 : f32 to vector<1x128xf32>
    %16 = arith.addf %13, %15 : vector<1x128xf32>
    %17 = arith.negf %16 : vector<1x128xf32>
    %18 = math.exp %17 : vector<1x128xf32>
    %cst_9 = arith.constant 1.000000e+00 : f32
    %19 = vector.broadcast %cst_9 : f32 to vector<1x128xf32>
    %20 = arith.addf %19, %18 : vector<1x128xf32>
    %21 = arith.divf %19, %20 : vector<1x128xf32>
    %c0_10 = arith.constant 0 : index
    %c0_11 = arith.constant 0 : index
    %22 = vector.load %arg5[%c0_10, %c0_11] : memref<1x128xf32, #tpu.memory_space<vmem>>, vector<1x128xf32>
    tpu.vector_store %arg5[%c0_10, %c0_11], %21 {strides = array<i32>} : memref<1x128xf32, #tpu.memory_space<vmem>>, vector<1x128xf32>,
    return
  }
  func.func @transform_0(%arg0: i32) -> (i32, i32) {
    %c0_i32 = arith.constant 0 : i32
    %c0_i32_0 = arith.constant 0 : i32
    return %c0_i32, %arg0 : i32, i32
  }
  func.func @transform_1(%arg0: i32) -> (i32, i32) {
    %c0_i32 = arith.constant 0 : i32
    %c0_i32_0 = arith.constant 0 : i32
    %c0_i32_1 = arith.constant 0 : i32
    return %c0_i32, %c0_i32_0 : i32, i32
  }
  func.func @transform_2(%arg0: i32) -> (i32, i32) {
    %c0_i32 = arith.constant 0 : i32
    %c0_i32_0 = arith.constant 0 : i32
    %c0_i32_1 = arith.constant 0 : i32
    return %c0_i32, %c0_i32_0 : i32, i32
  }
  func.func @transform_3(%arg0: i32) -> (i32, i32) {
    %c0_i32 = arith.constant 0 : i32
    %c0_i32_0 = arith.constant 0 : i32
    %c0_i32_1 = arith.constant 0 : i32
    return %c0_i32, %c0_i32_0 : i32, i32
  }
  func.func @transform_4(%arg0: i32) -> (i32, i32) {
    %c0_i32 = arith.constant 0 : i32
    %c0_i32_0 = arith.constant 0 : i32
    return %c0_i32, %arg0 : i32, i32
  }
}

</mosaic_0001>

<llo_original>
// kernel: superfelt_forward.1
$region0: #{superfelt_forward.1}
  #allocation0 [shape = 'u32[]', space=smem, size = 0x4, offset = 0x4, fixed_abs, tag = 'smem constant byte address 0x4 - core index']
  #allocation1 [shape = 'u32[144,128]{1,0:T(1,128)}', space=vmem, size = 0x12000, scoped, tag = 'internal scratch']
  #allocation2 [shape = 'f32[1,1]{1,0:T(1,128)S(6)}', space=smem, size = 0x200, scoped, tag = 'scoped memory for superfelt_forward.1']
  %s0 = inlined_call_operand.vmem [shape: f32[72,128], index: 0, kind: input, shape index: {}]
  %s1 = inlined_call_operand.vmem [shape: f32[96,72], index: 1, kind: input, shape index: {}]
  %s2 = inlined_call_operand.vmem [shape: f32[96,2], index: 2, kind: input, shape index: {}]
  %s3 = inlined_call_operand.<no memory space> [shape: f32[1,1], index: 3, kind: input, shape index: {}]
  %s4 = inlined_call_operand.vmem [shape: f32[1,128], index: 4, kind: output, shape index: {}]
  %s5 = sld [smem:[#allocation0]]
  $region26: #{superfelt_forward.1} parent=0
    _
  %s7 = ssub.s32 1, %s5
  %s8 = scalar_select 0, %s7, %s5
  %9 = sst [smem:[#allocation2]] %s3
  // Predicated region
  $region2: #{superfelt_forward.1} parent=0 // pred_check
    _
  $region3: #{superfelt_forward.1} parent=0 // pred_check_branch
    %11 = sbr.rel (0) target = $region5
  $region4: #{superfelt_forward.1} parent=0 // pred_region
    _
  $region5: #{superfelt_forward.1} parent=0 // pred_fallthru
    _
  // Predicated region
  $region6: #{superfelt_forward.1} parent=0 // pred_check
    _
  $region7: #{superfelt_forward.1} parent=0 // pred_check_branch
    %13 = sbr.rel (0) target = $region9
  $region8: #{superfelt_forward.1} parent=0 // pred_region
    _
  $region9: #{superfelt_forward.1} parent=0 // pred_fallthru
    _
  // Predicated region
  $region10: #{superfelt_forward.1} parent=0 // pred_check
    _
  $region11: #{superfelt_forward.1} parent=0 // pred_check_branch
    %15 = sbr.rel (0) target = $region13
  $region12: #{superfelt_forward.1} parent=0 // pred_region
    _
  $region13: #{superfelt_forward.1} parent=0 // pred_fallthru
    _
  // Predicated region
  $region14: #{superfelt_forward.1} parent=0 // pred_check
    _
  $region15: #{superfelt_forward.1} parent=0 // pred_check_branch
    %17 = sbr.rel (0) target = $region17
  $region16: #{superfelt_forward.1} parent=0 // pred_region
    _
  $region17: #{superfelt_forward.1} parent=0 // pred_fallthru
    _
  %v18 = vld [vmem:[%s0] sm:$0xff]
  %v19 = vld [vmem:[%s0 + $0x8] sm:$0xff]
  %v20 = vld [vmem:[%s0 + $0x10] sm:$0xff]
  %v21 = vld [vmem:[%s0 + $0x18] sm:$0xff]
  %v22 = vld [vmem:[%s0 + $0x20] sm:$0xff]
  %v23 = vld [vmem:[%s0 + $0x28] sm:$0xff]
  %v24 = vld [vmem:[%s0 + $0x30] sm:$0xff]
  %v25 = vld [vmem:[%s0 + $0x38] sm:$0xff]
  %v26 = vld [vmem:[%s0 + $0x40] sm:$0xff]
  %v27 = vld [vmem:[%s1] sm:$0xff]
  %v28 = vld [vmem:[%s1 + $0x8] sm:$0xff]
  %v29 = vld [vmem:[%s1 + $0x10] sm:$0xff]
  %v30 = vld [vmem:[%s1 + $0x18] sm:$0xff]
  %v31 = vld [vmem:[%s1 + $0x20] sm:$0xff]
  %v32 = vld [vmem:[%s1 + $0x28] sm:$0xff]
  %v33 = vld [vmem:[%s1 + $0x30] sm:$0xff]
  %v34 = vld [vmem:[%s1 + $0x38] sm:$0xff]
  %v35 = vld [vmem:[%s1 + $0x40] sm:$0xff]
  %v36 = vld [vmem:[%s1 + $0x48] sm:$0xff]
  %v37 = vld [vmem:[%s1 + $0x50] sm:$0xff]
  %v38 = vld [vmem:[%s1 + $0x58] sm:$0xff]
  %v39 = vld [vmem:[%s2] sm:$0xff]
  %v40 = vld [vmem:[%s2 + $0x8] sm:$0xff]
  %v41 = vld [vmem:[%s2 + $0x10] sm:$0xff]
  %v42 = vld [vmem:[%s2 + $0x18] sm:$0xff]
  %v43 = vld [vmem:[%s2 + $0x20] sm:$0xff]
  %v44 = vld [vmem:[%s2 + $0x28] sm:$0xff]
  %v45 = vld [vmem:[%s2 + $0x30] sm:$0xff]
  %v46 = vld [vmem:[%s2 + $0x38] sm:$0xff]
  %v47 = vld [vmem:[%s2 + $0x40] sm:$0xff]
  %v48 = vld [vmem:[%s2 + $0x48] sm:$0xff]
  %v49 = vld [vmem:[%s2 + $0x50] sm:$0xff]
  %v50 = vld [vmem:[%s2 + $0x58] sm:$0xff]
  %52 = vset.pattern.permute.xlu0 0
  %53 = vperm.xlu0 %52, %v39
  %v54 = vpop.permute.xlu0 %53
  %57 = vset.pattern.permute.xlu0 0
  %58 = vperm.xlu0 %57, %v40
  %v59 = vpop.permute.xlu0 %58
  %62 = vset.pattern.permute.xlu0 0
  %63 = vperm.xlu0 %62, %v41
  %v64 = vpop.permute.xlu0 %63
  %67 = vset.pattern.permute.xlu0 0
  %68 = vperm.xlu0 %67, %v42
  %v69 = vpop.permute.xlu0 %68
  %72 = vset.pattern.permute.xlu0 0
  %73 = vperm.xlu0 %72, %v43
  %v74 = vpop.permute.xlu0 %73
  %77 = vset.pattern.permute.xlu0 0
  %78 = vperm.xlu0 %77, %v44
  %v79 = vpop.permute.xlu0 %78
  %82 = vset.pattern.permute.xlu0 0
  %83 = vperm.xlu0 %82, %v45
  %v84 = vpop.permute.xlu0 %83
  %87 = vset.pattern.permute.xlu0 0
  %88 = vperm.xlu0 %87, %v46
  %v89 = vpop.permute.xlu0 %88
  %92 = vset.pattern.permute.xlu0 0
  %93 = vperm.xlu0 %92, %v47
  %v94 = vpop.permute.xlu0 %93
  %97 = vset.pattern.permute.xlu0 0
  %98 = vperm.xlu0 %97, %v48
  %v99 = vpop.permute.xlu0 %98
  %102 = vset.pattern.permute.xlu0 0
  %103 = vperm.xlu0 %102, %v49
  %v104 = vpop.permute.xlu0 %103
  %107 = vset.pattern.permute.xlu0 0
  %108 = vperm.xlu0 %107, %v50
  %v109 = vpop.permute.xlu0 %108
  %vm111 = vcmask 588800
  %v113 = vsel %vm111, %v27, 0
  %v116 = vsel %vm111, %v28, 0
  %v119 = vsel %vm111, %v29, 0
  %v122 = vsel %vm111, %v30, 0
  %v125 = vsel %vm111, %v31, 0
  %v128 = vsel %vm111, %v32, 0
  %v131 = vsel %vm111, %v33, 0
  %v134 = vsel %vm111, %v34, 0
  %v137 = vsel %vm111, %v35, 0
  %v140 = vsel %vm111, %v36, 0
  %v143 = vsel %vm111, %v37, 0
  %v146 = vsel %vm111, %v38, 0
  %148 = vmatprep.subr.mxu0 0.0
  %149 = vmatpush1.msra.mxu0 %v18
  %150 = vmatprep.subr.mxu0 0.0
  %151 = vmatpush1.msra.mxu0 %v19
  %152 = vmatprep.subr.mxu0 0.0
  %153 = vmatpush1.msra.mxu0 %v20
  %154 = vmatprep.subr.mxu0 0.0
  %155 = vmatpush1.msra.mxu0 %v21
  %156 = vmatprep.subr.mxu0 0.0
  %157 = vmatpush1.msra.mxu0 %v22
  %158 = vmatprep.subr.mxu0 0.0
  %159 = vmatpush1.msra.mxu0 %v23
  %160 = vmatprep.subr.mxu0 0.0
  %161 = vmatpush1.msra.mxu0 %v24
  %162 = vmatprep.subr.mxu0 0.0
  %163 = vmatpush1.msra.mxu0 %v25
  %164 = vmatprep.subr.mxu0 0.0
  %165 = vmatpush1.msra.mxu0 %v26
  %166 = vmatprep.subr.mxu0 0.0
  %167 = vmatpush1.msra.mxu0 0.0
  %168 = vmatprep.subr.mxu0 0.0
  %169 = vmatpush1.msra.mxu0 0.0
  %170 = vmatprep.subr.mxu0 0.0
  %171 = vmatpush1.msra.mxu0 0.0
  %172 = vmatprep.subr.mxu0 0.0
  %173 = vmatpush1.msra.mxu0 0.0
  %174 = vmatprep.subr.mxu0 0.0
  %175 = vmatpush1.msra.mxu0 0.0
  %176 = vmatprep.subr.mxu0 0.0
  %177 = vmatpush1.msra.mxu0 0.0
  %178 = vmatprep.subr.mxu0 0.0
  %179 = vmatpush1.msra.mxu0 0.0
  %180 = vmatprep.subr.mxu0 0.0
  %181 = vmatpush1.msra.mxu0 0.0
  %182 = vmatprep.subr.mxu0 0.0
  %183 = vmatpush1.msra.mxu0 0.0
  %184 = vmatprep.subr.mxu0 0.0
  %185 = vmatpush1.msra.mxu0 0.0
  %186 = vmatprep.subr.mxu0 0.0
  %187 = vmatpush1.msra.mxu0 0.0
  %188 = vmatprep.subr.mxu0 0.0
  %189 = vmatpush1.msra.mxu0 0.0
  %190 = vmatprep.subr.mxu0 0.0
  %191 = vmatpush1.msra.mxu0 0.0
  %192 = vmatprep.subr.mxu0 0.0
  %193 = vmatpush1.msra.mxu0 0.0
  %194 = vmatprep.subr.mxu0 0.0
  %195 = vmatpush1.msra.mxu0 0.0
  %196 = vmatprep.subr.mxu0 0.0
  %197 = vmatpush1.msra.mxu0 0.0
  %198 = vmatprep.subr.mxu0 0.0
  %199 = vmatpush1.msra.mxu0 0.0
  %200 = vmatprep.subr.mxu0 0.0
  %201 = vmatpush1.msra.mxu0 0.0
  %202 = vmatprep.subr.mxu0 0.0
  %203 = vmatpush1.msra.mxu0 0.0
  %204 = vmatprep.subr.mxu0 0.0
  %205 = vmatpush1.msra.mxu0 0.0
  %206 = vmatprep.subr.mxu0 0.0
  %207 = vmatpush1.msra.mxu0 0.0
  %208 = vmatprep.subr.mxu0 0.0
  %209 = vmatpush1.msra.mxu0 0.0
  %210 = vmatprep.subr.mxu0 0.0
  %211 = vmatpush1.msra.mxu0 0.0
  %212 = vmatprep.mubr.f32.mxu0 0.0
  %213 = vmatmul.mubr.f32.gmra.mrb[0].mxu0 %v113
  %v214 = vpop.f32.mrb[0].mxu0
  %v215 = vadd.f32 %v54, %v214
  %v216 = vpop.f32.mrb[0].mxu0
  %217 = vmatprep.mubr.f32.mxu0 0.0
  %218 = vmatmul.mubr.f32.gmra.mrb[0].mxu0 %v116
  %v219 = vpop.f32.mrb[0].mxu0
  %v220 = vadd.f32 %v59, %v219
  %v221 = vpop.f32.mrb[0].mxu0
  %222 = vmatprep.mubr.f32.mxu0 0.0
  %223 = vmatmul.mubr.f32.gmra.mrb[0].mxu0 %v119
  %v224 = vpop.f32.mrb[0].mxu0
  %v225 = vadd.f32 %v64, %v224
  %v226 = vpop.f32.mrb[0].mxu0
  %227 = vmatprep.mubr.f32.mxu0 0.0
  %228 = vmatmul.mubr.f32.gmra.mrb[0].mxu0 %v122
  %v229 = vpop.f32.mrb[0].mxu0
  %v230 = vadd.f32 %v69, %v229
  %v231 = vpop.f32.mrb[0].mxu0
  %232 = vmatprep.mubr.f32.mxu0 0.0
  %233 = vmatmul.mubr.f32.gmra.mrb[0].mxu0 %v125
  %v234 = vpop.f32.mrb[0].mxu0
  %v235 = vadd.f32 %v74, %v234
  %v236 = vpop.f32.mrb[0].mxu0
  %237 = vmatprep.mubr.f32.mxu0 0.0
  %238 = vmatmul.mubr.f32.gmra.mrb[0].mxu0 %v128
  %v239 = vpop.f32.mrb[0].mxu0
  %v240 = vadd.f32 %v79, %v239
  %v241 = vpop.f32.mrb[0].mxu0
  %242 = vmatprep.mubr.f32.mxu0 0.0
  %243 = vmatmul.mubr.f32.gmra.mrb[0].mxu0 %v131
  %v244 = vpop.f32.mrb[0].mxu0
  %v245 = vadd.f32 %v84, %v244
  %v246 = vpop.f32.mrb[0].mxu0
  %247 = vmatprep.mubr.f32.mxu0 0.0
  %248 = vmatmul.mubr.f32.gmra.mrb[0].mxu0 %v134
  %v249 = vpop.f32.mrb[0].mxu0
  %v250 = vadd.f32 %v89, %v249
  %v251 = vpop.f32.mrb[0].mxu0
  %252 = vmatprep.mubr.f32.mxu0 0.0
  %253 = vmatmul.mubr.f32.gmra.mrb[0].mxu0 %v137
  %v254 = vpop.f32.mrb[0].mxu0
  %v255 = vadd.f32 %v94, %v254
  %v256 = vpop.f32.mrb[0].mxu0
  %257 = vmatprep.mubr.f32.mxu0 0.0
  %258 = vmatmul.mubr.f32.gmra.mrb[0].mxu0 %v140
  %v259 = vpop.f32.mrb[0].mxu0
  %v260 = vadd.f32 %v99, %v259
  %v261 = vpop.f32.mrb[0].mxu0
  %262 = vmatprep.mubr.f32.mxu0 0.0
  %263 = vmatmul.mubr.f32.gmra.mrb[0].mxu0 %v143
  %v264 = vpop.f32.mrb[0].mxu0
  %v265 = vadd.f32 %v104, %v264
  %v266 = vpop.f32.mrb[0].mxu0
  %267 = vmatprep.mubr.f32.mxu0 0.0
  %268 = vmatmul.mubr.f32.gmra.mrb[0].mxu0 %v146
  %v269 = vpop.f32.mrb[0].mxu0
  %v270 = vadd.f32 %v109, %v269
  %v271 = vpop.f32.mrb[0].mxu0
  %272 = vdwg.mxu0
  %v273 = vmax.f32 %v215, 0.0
  %v274 = vmax.f32 %v220, 0.0
  %v275 = vmax.f32 %v225, 0.0
  %v276 = vmax.f32 %v230, 0.0
  %v277 = vmax.f32 %v235, 0.0
  %v278 = vmax.f32 %v240, 0.0
  %v279 = vmax.f32 %v245, 0.0
  %v280 = vmax.f32 %v250, 0.0
  %v281 = vmax.f32 %v255, 0.0
  %v282 = vmax.f32 %v260, 0.0
  %v283 = vmax.f32 %v265, 0.0
  %v284 = vmax.f32 %v270, 0.0
  %285 = vset.pattern.permute.xlu0 1
  %286 = vperm.xlu0 %285, %v39
  %v287 = vpop.permute.xlu0 %286
  %289 = vset.pattern.permute.xlu0 1
  %290 = vperm.xlu0 %289, %v40
  %v291 = vpop.permute.xlu0 %290
  %293 = vset.pattern.permute.xlu0 1
  %294 = vperm.xlu0 %293, %v41
  %v295 = vpop.permute.xlu0 %294
  %297 = vset.pattern.permute.xlu0 1
  %298 = vperm.xlu0 %297, %v42
  %v299 = vpop.permute.xlu0 %298
  %301 = vset.pattern.permute.xlu0 1
  %302 = vperm.xlu0 %301, %v43
  %v303 = vpop.permute.xlu0 %302
  %305 = vset.pattern.permute.xlu0 1
  %306 = vperm.xlu0 %305, %v44
  %v307 = vpop.permute.xlu0 %306
  %309 = vset.pattern.permute.xlu0 1
  %310 = vperm.xlu0 %309, %v45
  %v311 = vpop.permute.xlu0 %310
  %313 = vset.pattern.permute.xlu0 1
  %314 = vperm.xlu0 %313, %v46
  %v315 = vpop.permute.xlu0 %314
  %317 = vset.pattern.permute.xlu0 1
  %318 = vperm.xlu0 %317, %v47
  %v319 = vpop.permute.xlu0 %318
  %321 = vset.pattern.permute.xlu0 1
  %322 = vperm.xlu0 %321, %v48
  %v323 = vpop.permute.xlu0 %322
  %325 = vset.pattern.permute.xlu0 1
  %326 = vperm.xlu0 %325, %v49
  %v327 = vpop.permute.xlu0 %326
  %329 = vset.pattern.permute.xlu0 1
  %330 = vperm.xlu0 %329, %v50
  %v331 = vpop.permute.xlu0 %330
  %v333 = vmul.f32 %v273, %v287
  %v334 = vmul.f32 %v274, %v291
  %v335 = vmul.f32 %v275, %v295
  %v336 = vmul.f32 %v276, %v299
  %v337 = vmul.f32 %v277, %v303
  %v338 = vmul.f32 %v278, %v307
  %v339 = vmul.f32 %v279, %v311
  %v340 = vmul.f32 %v280, %v315
  %v341 = vmul.f32 %v281, %v319
  %v342 = vmul.f32 %v282, %v323
  %v343 = vmul.f32 %v283, %v327
  %v344 = vmul.f32 %v284, %v331
  %v345 = vadd.f32 %v333, %v334
  %v346 = vadd.f32 %v345, %v335
  %v347 = vadd.f32 %v346, %v336
  %v348 = vadd.f32 %v347, %v337
  %v349 = vadd.f32 %v348, %v338
  %v350 = vadd.f32 %v349, %v339
  %v351 = vadd.f32 %v350, %v340
  %v352 = vadd.f32 %v351, %v341
  %v353 = vadd.f32 %v352, %v342
  %v354 = vadd.f32 %v353, %v343
  %v355 = vadd.f32 %v354, %v344
  %v356 = vrot.slane %v355, 4
  %v357 = vadd.f32 %v355, %v356
  %v358 = vrot.slane %v357, 2
  %v359 = vadd.f32 %v357, %v358
  %v360 = vrot.slane %v359, 1
  %v361 = vadd.f32 %v359, %v360
  %s362 = sld [smem:[#allocation2]]
  %v363 = vstv %s362
  %v364 = vadd.f32 %v361, %v363
  %v365 = vxor.u32 %v364, 2147483648
  %v366 = vmul.f32 %v365, 1.442695
  %v367 = vpow.pop %v366
  %v368 = vadd.f32 %v367, 1.0
  %v369 = vrcp.pop %v368
  %v370 = vmul.f32 1.0, %v369
  %371 = vst [vmem:[%s4] sm:$0x1] %v370
  // Predicated region
  $region18: #{superfelt_forward.1} parent=0 // pred_check
    _
  $region19: #{superfelt_forward.1} parent=0 // pred_check_branch
    %373 = sbr.rel (0) target = $region21
  $region20: #{superfelt_forward.1} parent=0 // pred_region
    _
  $region21: #{superfelt_forward.1} parent=0 // pred_fallthru
    _
  // Predicated region
  $region22: #{superfelt_forward.1} parent=0 // pred_check
    _
  $region23: #{superfelt_forward.1} parent=0 // pred_check_branch
    %375 = sbr.rel (0) target = $region25
  $region24: #{superfelt_forward.1} parent=0 // pred_region
    _
  $region25: #{superfelt_forward.1} parent=0 // pred_fallthru
    _

</llo_original>
